<compile_context>
chip_gen: v7x
topology: tpu7x:2x2x1
jax: 0.10.0
libtpu: 0.0.40
codegen_flags: <defaults>
</compile_context>

<pallas_src>
import jax
import jax.numpy as jnp
from jax.experimental import pallas as pl
from jax.experimental.pallas import tpu as pltpu

EPS = 1e-5


def bn_conv_kernel(x_ref, p_ref, o_ref):
    # x_ref: (N, DHW)          f32, VMEM   (single input channel, flattened)
    # p_ref: (2*C_out,)        f32, SMEM   [w'_0..w'_{C-1}, b'_0..b'_{C-1}]
    #                                      (BN-affine already folded into conv)
    # o_ref: (N, C_out * DHW)  f32, VMEM
    x = x_ref[...]

    # Single-pass batch statistics over all elements of the single channel
    # (biased variance, training-mode BN). keepdims keeps everything >= 2-D
    # for robust TPU lowering; the (1,1) results broadcast for free.
    inv_p = 1.0 / x.size
    s = jnp.sum(x, keepdims=True)
    ss = jnp.sum(x * x, keepdims=True)
    mean = s * inv_p
    # Clamp: E[x^2] - E[x]^2 can cancel slightly negative when |mean| >> std.
    var = jnp.maximum(ss * inv_p - mean * mean, 0.0)
    inv_std = jax.lax.rsqrt(var + EPS)          # EUP rsqrt (free-ish slot)

    # Fold the reduced stats into per-channel scalar scale/shift so the data
    # sees exactly one multiply-add per output channel (VPU scalar-splat).
    c_out = o_ref.shape[-1] // x_ref.shape[-1]
    rows = []
    for c in range(c_out):
        w_c = p_ref[c]
        b_c = p_ref[c_out + c]
        scale = w_c * inv_std                   # (1,1) scalar math
        shift = b_c - w_c * mean * inv_std      # (1,1) scalar math
        rows.append(scale * x + shift)
    # Lane-concat -> one unmasked full-width (N, 128) store.
    o_ref[...] = jnp.concatenate(rows, axis=-1)


def model_forward(x, gamma, beta, w, b):
    """x: (N, 1, D, H, W) float32; w: (C_out, C_in); b: (C_out,).
    Returns (N, C_out, D, H, W)."""
    N, C_in, D, H, W = x.shape
    assert C_in == 1, "kernel specialises the C_in == 1 case of the module"
    C_out = w.shape[0]
    DHW = D * H * W

    # Free reshape (C_in == 1): NCDHW -> (N, D*H*W); no physical copy.
    x2d = x.reshape(N, DHW)

    # Fold BN affine into the conv:  w*(gamma*xn0 + beta) + b
    w1 = w.reshape(C_out, C_in)[:, 0]
    w_fold = (w1 * gamma[0]).astype(jnp.float32)
    b_fold = (w1 * beta[0] + b).astype(jnp.float32)
    params = jnp.concatenate([w_fold, b_fold])   # single SMEM operand

    vmem = pl.BlockSpec(memory_space=pltpu.MemorySpace.VMEM)
    smem = pl.BlockSpec(memory_space=pltpu.MemorySpace.SMEM)

    out2d = pl.pallas_call(
        bn_conv_kernel,
        out_shape=jax.ShapeDtypeStruct((N, C_out * DHW), x.dtype),
        in_specs=[vmem, smem],
        out_specs=vmem,
        cost_estimate=pl.CostEstimate(
            flops=4 * N * DHW * (1 + C_out),
            transcendentals=1,
            bytes_accessed=4 * (N * DHW + N * C_out * DHW),
        ),
    )(x2d, params)

    # Free reshape: (N, C_out*DHW) is row-major identical to (N, C_out, D, H, W).
    return out2d.reshape(N, C_out, D, H, W)


def reference_forward(x, gamma, beta, w, b):
    # Pure-JAX reference of BN (training stats, per input channel) + 1x1x1 conv.
    mean = jnp.mean(x, axis=(0, 2, 3, 4), keepdims=True)
    var = jnp.mean((x - mean) ** 2, axis=(0, 2, 3, 4), keepdims=True)
    xn = (x - mean) / jnp.sqrt(var + EPS)
    xn = xn * gamma.reshape(1, -1, 1, 1, 1) + beta.reshape(1, -1, 1, 1, 1)
    y = jnp.einsum("ncdhw,oc->nodhw", xn, w) + b.reshape(1, -1, 1, 1, 1)
    return y


if __name__ == "__main__":
    key = jax.random.PRNGKey(0)
    kx, kw, kb = jax.random.split(key, 3)

    # Input shape from the module: (4, 1, 4, 4, 4)
    N, C_in, D, H, W = 4, 1, 4, 4, 4
    C_out = 2
    x1 = jax.random.normal(kx, (N, C_in, D, H, W), dtype=jnp.float32)

    # BatchNorm3d params (default init: gamma=1, beta=0). Declared size 2 in the
    # module; only the first C_in entries are usable (see TODO above).
    gamma_full = jnp.ones((2,), dtype=jnp.float32)
    beta_full = jnp.zeros((2,), dtype=jnp.float32)
    gamma = gamma_full[:C_in]
    beta = beta_full[:C_in]

    # Conv3d(1, 2, 1) params: weight (2,1,1,1,1), bias (2,).
    # Uniform init in [-1/sqrt(fan_in), 1/sqrt(fan_in)], fan_in = 1.
    bound = 1.0
    w = jax.random.uniform(kw, (C_out, C_in, 1, 1, 1), jnp.float32, -bound, bound)
    b = jax.random.uniform(kb, (C_out,), jnp.float32, -bound, bound)

    out = model_forward(x1, gamma, beta, w.reshape(C_out, C_in), b)
    out = jax.block_until_ready(out)

    ref = reference_forward(x1, gamma, beta, w.reshape(C_out, C_in), b)
    assert out.shape == (N, C_out, D, H, W), out.shape
    assert jnp.allclose(out, ref, atol=1e-5, rtol=1e-5), "mismatch vs reference"

    print("KERNEL_OK")
</pallas_src>

<mosaic_0001>
module attributes {stable_mosaic.version = 11 : i64} {
  func.func @bn_conv_kernel(%arg0: memref<4x64xf32, #tpu.memory_space<vmem>>, %arg1: memref<4xf32, #tpu.memory_space<smem>>, %arg2: memref<4x128xf32, #tpu.memory_space<vmem>>) attributes {dimension_semantics = [], scalar_prefetch = 0 : i64, scratch_operands = 0 : i64, tpu.core_type = #tpu.core_type<tc>} {
    %c0 = arith.constant 0 : index
    %c0_0 = arith.constant 0 : index
    %0 = vector.load %arg0[%c0, %c0_0] : memref<4x64xf32, #tpu.memory_space<vmem>>, vector<4x64xf32>
    %1 = vector.shape_cast %0 : vector<4x64xf32> to vector<1x4x64xf32>
    %cst = arith.constant dense<0.000000e+00> : vector<1xf32>
    %2 = vector.multi_reduction <add>, %1, %cst [1, 2] : vector<1x4x64xf32> to vector<1xf32>
    %3 = vector.shape_cast %2 : vector<1xf32> to vector<1x1x1xf32>
    %4 = vector.extract %3[0, 0, 0] : f32 from vector<1x1x1xf32>
    %5 = vector.broadcast %4 : f32 to vector<1x1xf32>
    %6 = arith.mulf %0, %0 : vector<4x64xf32>
    %7 = vector.shape_cast %6 : vector<4x64xf32> to vector<1x4x64xf32>
    %cst_1 = arith.constant dense<0.000000e+00> : vector<1xf32>
    %8 = vector.multi_reduction <add>, %7, %cst_1 [1, 2] : vector<1x4x64xf32> to vector<1xf32>
    %9 = vector.shape_cast %8 : vector<1xf32> to vector<1x1x1xf32>
    %10 = vector.extract %9[0, 0, 0] : f32 from vector<1x1x1xf32>
    %11 = vector.broadcast %10 : f32 to vector<1x1xf32>
    %cst_2 = arith.constant 3.906250e-03 : f32
    %12 = vector.broadcast %cst_2 : f32 to vector<1x1xf32>
    %13 = arith.mulf %5, %12 : vector<1x1xf32>
    %cst_3 = arith.constant 3.906250e-03 : f32
    %14 = vector.broadcast %cst_3 : f32 to vector<1x1xf32>
    %15 = arith.mulf %11, %14 : vector<1x1xf32>
    %16 = arith.mulf %13, %13 : vector<1x1xf32>
    %17 = arith.subf %15, %16 : vector<1x1xf32>
    %cst_4 = arith.constant 0.000000e+00 : f32
    %18 = vector.broadcast %cst_4 : f32 to vector<1x1xf32>
    %19 = arith.maximumf %17, %18 : vector<1x1xf32>
    %cst_5 = arith.constant 9.99999974E-6 : f32
    %20 = vector.broadcast %cst_5 : f32 to vector<1x1xf32>
    %21 = arith.addf %19, %20 : vector<1x1xf32>
    %22 = math.rsqrt %21 : vector<1x1xf32>
    %c0_6 = arith.constant 0 : index
    %23 = memref.load %arg1[%c0_6] : memref<4xf32, #tpu.memory_space<smem>>
    %c2 = arith.constant 2 : index
    %24 = memref.load %arg1[%c2] : memref<4xf32, #tpu.memory_space<smem>>
    %25 = vector.broadcast %23 : f32 to vector<1x1xf32>
    %26 = arith.mulf %25, %22 : vector<1x1xf32>
    %27 = vector.broadcast %23 : f32 to vector<1x1xf32>
    %28 = arith.mulf %27, %13 : vector<1x1xf32>
    %29 = arith.mulf %28, %22 : vector<1x1xf32>
    %30 = vector.broadcast %24 : f32 to vector<1x1xf32>
    %31 = arith.subf %30, %29 : vector<1x1xf32>
    %32 = vector.broadcast %26 : vector<1x1xf32> to vector<4x64xf32>
    %33 = arith.mulf %32, %0 : vector<4x64xf32>
    %34 = vector.broadcast %31 : vector<1x1xf32> to vector<4x64xf32>
    %35 = arith.addf %33, %34 : vector<4x64xf32>
    %c1 = arith.constant 1 : index
    %36 = memref.load %arg1[%c1] : memref<4xf32, #tpu.memory_space<smem>>
    %c3 = arith.constant 3 : index
    %37 = memref.load %arg1[%c3] : memref<4xf32, #tpu.memory_space<smem>>
    %38 = vector.broadcast %36 : f32 to vector<1x1xf32>
    %39 = arith.mulf %38, %22 : vector<1x1xf32>
    %40 = vector.broadcast %36 : f32 to vector<1x1xf32>
    %41 = arith.mulf %40, %13 : vector<1x1xf32>
    %42 = arith.mulf %41, %22 : vector<1x1xf32>
    %43 = vector.broadcast %37 : f32 to vector<1x1xf32>
    %44 = arith.subf %43, %42 : vector<1x1xf32>
    %45 = vector.broadcast %39 : vector<1x1xf32> to vector<4x64xf32>
    %46 = arith.mulf %45, %0 : vector<4x64xf32>
    %47 = vector.broadcast %44 : vector<1x1xf32> to vector<4x64xf32>
    %48 = arith.addf %46, %47 : vector<4x64xf32>
    %49 = tpu.concatenate %35, %48 in 1 : vector<4x64xf32>, vector<4x64xf32> -> vector<4x128xf32>
    %c0_7 = arith.constant 0 : index
    %c0_8 = arith.constant 0 : index
    %50 = vector.load %arg2[%c0_7, %c0_8] : memref<4x128xf32, #tpu.memory_space<vmem>>, vector<4x128xf32>
    tpu.vector_store %arg2[%c0_7, %c0_8], %49 {strides = array<i32>} : memref<4x128xf32, #tpu.memory_space<vmem>>, vector<4x128xf32>,
    return
  }
}

</mosaic_0001>

<llo_original>
// kernel: tpu_custom_call.1
$region0: #{tpu_custom_call.1}
  #allocation0 [shape = 'u32[]', space=smem, size = 0x4, offset = 0x4, fixed_abs, tag = 'smem constant byte address 0x4 - core index']
  #allocation1 [shape = 'u32[144,128]{1,0:T(1,128)}', space=vmem, size = 0x12000, scoped, tag = 'internal scratch']
  %s0 = inlined_call_operand.hbm [shape: f32[4,64], index: 0, kind: input, shape index: {}]
  %s1 = inlined_call_operand.vmem [shape: f32[4], index: 1, kind: input, shape index: {}]
  %s2 = inlined_call_operand.hbm [shape: f32[4,128], index: 2, kind: output, shape index: {}]
  %s3 = sld [smem:[#allocation0]]
  $region26: #{tpu_custom_call.1} parent=0
    _
  %s5 = ssub.s32 1, %s3
  %s6 = scalar_select 0, %s5, %s3
  $region1: #{tpu_custom_call.1} parent=0
    #allocation2 [shape = 'u8[2048]{0}', space=vmem, size = 0x800, scoped, tag = 'input window, operand 0, single buffered']
    #allocation3 [shape = 's32[1]{0}', space=sflag, size = 0x4, scoped, tag = 'scoped memory for tpu_custom_call.1']
    #allocation4 [shape = 's32[1]{0}', space=sflag, size = 0x4, scoped, tag = 'scoped memory for tpu_custom_call.1']
    #allocation5 [shape = 's32[1]{0}', space=sflag, size = 0x4, scoped, tag = 'scoped memory for tpu_custom_call.1']
    #allocation6 [shape = 'u8[512]{0}', space=smem, size = 0x200, scoped, tag = 'input window, operand 1, single buffered']
    #allocation7 [shape = 'u8[2048]{0}', space=vmem, size = 0x800, scoped, tag = 'output window, operand 0, single buffered']
    %7 = vsyncpa [#allocation3], 0
    %8 = vsyncpa [#allocation5], 0
    %9 = vsyncpa [#allocation4], 0
    // Predicated region
    $region2: #{tpu_custom_call.1} parent=1 // pred_check
      _
    $region3: #{tpu_custom_call.1} parent=1 // pred_check_branch
      %11 = sbr.rel (0) target = $region5
    $region4: #{tpu_custom_call.1} parent=1 // pred_region
      %s13 = ssub.s32 64, 64
      %14 = vsyncadd [#allocation3], %s13
      %s16 = sshll.u32 [#allocation2], 4
      %s17 = int_to_ptr.vmem [resolvable:$true] %s16
      %19 = dma.hbm_to_vmem [thread:$0]  %s0, 64, %s17, [#allocation3]
    $region5: #{tpu_custom_call.1} parent=1 // pred_fallthru
      _
    // Predicated region
    $region6: #{tpu_custom_call.1} parent=1 // pred_check
      _
    $region7: #{tpu_custom_call.1} parent=1 // pred_check_branch
      %21 = sbr.rel (0) target = $region9
    $region8: #{tpu_custom_call.1} parent=1 // pred_region
      %s23 = ssub.s32 16, 16
      %24 = vsyncadd [#allocation5], %s23
      %s26 = sshll.u32 %s1, 4
      %s27 = int_to_ptr.vmem [resolvable:$true] %s26
      %29 = dma.vmem_to_smem %s27, 16, [#allocation6], [#allocation5]
    $region9: #{tpu_custom_call.1} parent=1 // pred_fallthru
      _
    // Predicated region
    $region10: #{tpu_custom_call.1} parent=1 // pred_check
      _
    $region11: #{tpu_custom_call.1} parent=1 // pred_check_branch
      %31 = sbr.rel (0) target = $region13
    $region12: #{tpu_custom_call.1} parent=1 // pred_region
      %32 = dma.done [#allocation3], 64
    $region13: #{tpu_custom_call.1} parent=1 // pred_fallthru
      _
    // Predicated region
    $region14: #{tpu_custom_call.1} parent=1 // pred_check
      _
    $region15: #{tpu_custom_call.1} parent=1 // pred_check_branch
      %34 = sbr.rel (0) target = $region17
    $region16: #{tpu_custom_call.1} parent=1 // pred_region
      %35 = dma.done [#allocation5], 16
    $region17: #{tpu_custom_call.1} parent=1 // pred_fallthru
      _
    %36 = sfence
    %v37 = vld [vmem:[#allocation2] sm:$0xf]
    %vm38 = vcmask 519168
    %v39 = vsel %vm38, %v37, 0.0
    %40 = vadd.xlane.f32.xlu0 %v39
    %v41 = vpop.xlane.xlu0 %40
    %v42 = vrot.slane %v41, 4
    %v43 = vadd.f32 %v41, %v42
    %v44 = vrot.slane %v43, 2
    %v45 = vadd.f32 %v43, %v44
    %v46 = vrot.slane %v45, 1
    %v47 = vadd.f32 %v45, %v46
    %s48 = vtos %v47
    %v49 = vstv %s48
    %v50 = vmul.f32 %v37, %v37
    %v51 = vsel %vm38, %v50, 0.0
    %52 = vadd.xlane.f32.xlu0 %v51
    %v53 = vpop.xlane.xlu0 %52
    %v54 = vrot.slane %v53, 4
    %v55 = vadd.f32 %v53, %v54
    %v56 = vrot.slane %v55, 2
    %v57 = vadd.f32 %v55, %v56
    %v58 = vrot.slane %v57, 1
    %v59 = vadd.f32 %v57, %v58
    %s60 = vtos %v59
    %v61 = vstv %s60
    %v62 = vmul.f32 %v49, 0.00390625
    %v63 = vmul.f32 %v61, 0.00390625
    %v64 = vmul.f32 %v62, %v62
    %v65 = vsub.f32 %v63, %v64
    %v66 = vmax.f32 %v65, 0.0
    %v67 = vadd.f32 %v66, 1e-05
    %v68 = vrsqrt.pop %v67
    %s69 = sld [smem:[#allocation6]]
    %s70 = sld [smem:[#allocation6 + $0x2]]
    %v71 = vstv %s69
    %v72 = vmul.f32 %v71, %v68
    %v73 = vmul.f32 %v71, %v62
    %v74 = vmul.f32 %v73, %v68
    %v75 = vstv %s70
    %v76 = vsub.f32 %v75, %v74
    %v77 = vmul.f32 %v72, %v37
    %v78 = vadd.f32 %v77, %v76
    %s79 = sld [smem:[#allocation6 + $0x1]]
    %s80 = sld [smem:[#allocation6 + $0x3]]
    %v81 = vstv %s79
    %v82 = vmul.f32 %v81, %v68
    %v83 = vmul.f32 %v81, %v62
    %v84 = vmul.f32 %v83, %v68
    %v85 = vstv %s80
    %v86 = vsub.f32 %v85, %v84
    %v87 = vmul.f32 %v82, %v37
    %v88 = vadd.f32 %v87, %v86
    %90 = vrot.lane.b32.xlu0 %v88, 64
    %v91 = vpop.permute.xlu0 %90
    %vm93 = vcmask 523264
    %v94 = vsel %vm93, %v78, %v91
    %95 = vst [vmem:[#allocation7] sm:$0xf] %v94
    // Predicated region
    $region18: #{tpu_custom_call.1} parent=1 // pred_check
      _
    $region19: #{tpu_custom_call.1} parent=1 // pred_check_branch
      %97 = sbr.rel (0) target = $region21
    $region20: #{tpu_custom_call.1} parent=1 // pred_region
      %s99 = ssub.s32 64, 64
      %100 = vsyncadd [#allocation4], %s99
      %s102 = sshll.u32 [#allocation7], 4
      %s103 = int_to_ptr.vmem [resolvable:$true] %s102
      %105 = dma.vmem_to_hbm [thread:$0]  %s103, 64, %s2, [#allocation4]
    $region21: #{tpu_custom_call.1} parent=1 // pred_fallthru
      _
    // Predicated region
    $region22: #{tpu_custom_call.1} parent=1 // pred_check
      _
    $region23: #{tpu_custom_call.1} parent=1 // pred_check_branch
      %107 = sbr.rel (0) target = $region25
    $region24: #{tpu_custom_call.1} parent=1 // pred_region
      %108 = dma.done [#allocation4], 64
    $region25: #{tpu_custom_call.1} parent=1 // pred_fallthru
      _
    %109 = vsyncpa [#allocation3], 1
    %110 = vsyncpa [#allocation4], 1
    %111 = vsyncpa [#allocation5], 1

</llo_original>
